<compile_context>
chip_gen: v6e
topology: v6e:2x2x1
jax: 0.10.0
libtpu: 0.0.40
codegen_flags: <defaults>
</compile_context>

<pallas_src>
import functools

import jax
import jax.numpy as jnp
from jax.experimental import pallas as pl
from jax.experimental.pallas import tpu as pltpu


def _round_up(v, m):
    return ((v + m - 1) // m) * m


# ---------------------------------------------------------------------------
# Fused kernel: x -> [Linear+ReLU]*(L-1) -> Linear -> Softmax(dim=1)
# ---------------------------------------------------------------------------
def _fused_mlp_kernel(x_ref, *refs, n_layers):
    """refs = (w1, b1, w2, b2, ..., wL, bL, o_ref).

    x: bf16 (tile_n, f_pad); weights bf16 (in_pad, out_pad); biases f32
    (1, out_pad); output f32 (tile_n, out_pad).  The FINAL bias carries -1e30
    in its padded lanes, so those lanes vanish in the softmax (exp -> 0).
    """
    o_ref = refs[-1]
    wb = refs[:-1]

    h = x_ref[...]                                     # bf16 (tile_n, f_pad)
    for i in range(n_layers):
        w = wb[2 * i][...]                             # bf16 (in_pad, out_pad)
        b = wb[2 * i + 1][...]                         # f32  (1, out_pad)
        y = jnp.dot(h.astype(jnp.bfloat16), w,
                    preferred_element_type=jnp.float32) + b
        if i < n_layers - 1:
            h = jnp.maximum(y, 0.0)                    # ReLU, f32 epilogue
        else:
            m = jnp.max(y, axis=1, keepdims=True)
            e = jnp.exp(y - m)                         # padded lanes -> 0
            denom = jnp.sum(e, axis=1, keepdims=True)
            o_ref[...] = (e / denom).astype(o_ref.dtype)


# ---------------------------------------------------------------------------
# Parameter init (mirrors torch.nn.Linear shapes/init bounds) + padding
# ---------------------------------------------------------------------------
def init_params(key, in_size, out_size, hidden_sizes):
    """Weight i: (in_i, out_i) f32 (i.e. torch W.T); bias i: (1, out_i) f32."""
    params = []
    prev = in_size
    for s in list(hidden_sizes) + [out_size]:
        key, kw, kb = jax.random.split(key, 3)
        bound = 1.0 / jnp.sqrt(jnp.float32(prev))
        w = jax.random.uniform(kw, (prev, s), jnp.float32, -bound, bound)
        b = jax.random.uniform(kb, (1, s), jnp.float32, -bound, bound)
        params.append((w, b))
        prev = s
    return params


def pad_params(params, in_size):
    """Zero-pad weights/biases to 128-lane-dense shapes; weights cast to bf16.

    The FINAL layer's padded bias lanes are set to -1e30 so the softmax mask is
    baked into the parameters (no iota/select in the kernel epilogue).
    """
    padded = []
    prev, prev_pad = in_size, _round_up(in_size, 128)
    n_layers = len(params)
    for li, (w, b) in enumerate(params):
        out = w.shape[1]
        out_pad = _round_up(out, 128)
        wp = jnp.zeros((prev_pad, out_pad), jnp.bfloat16)
        wp = wp.at[:prev, :out].set(w.astype(jnp.bfloat16))
        fill = -1e30 if li == n_layers - 1 else 0.0
        bp = jnp.full((1, out_pad), fill, jnp.float32)
        bp = bp.at[:, :out].set(b)
        padded.append((wp, bp))
        prev, prev_pad = out, out_pad
    return tuple(padded)


# ---------------------------------------------------------------------------
# Forward wrapper
# ---------------------------------------------------------------------------
@functools.partial(jax.jit, static_argnums=(2,))
def forward(x, padded_params, out_size):
    """x: [N, C, H, W] f32; padded_params: tuple of (w_bf16, b_f32) padded pairs."""
    n = x.shape[0]
    feat = 1
    for d in x.shape[1:]:
        feat *= d

    n_layers = len(padded_params)
    f_pad = padded_params[0][0].shape[0]
    out_pad = padded_params[-1][0].shape[1]

    # == torch x.flatten(1); cast to bf16 for the MXU.  No zeros+set round trip.
    h = x.reshape(n, feat).astype(jnp.bfloat16)
    if f_pad != feat:                       # no-op when feat is already 128-dense
        h = jnp.pad(h, ((0, 0), (0, f_pad - feat)))

    # Row tile: multiple of 8 (sublane, and of 256 once batches are large enough
    # to fill the v6e/v7x MXU); capped so the double-buffered activation blocks
    # plus resident weights stay comfortably inside scoped VMEM on every
    # generation (v5e 16 MiB .. v7x 32 MiB default).
    tile_n = min(512, _round_up(n, 8))
    n_pad = _round_up(n, tile_n)
    if n_pad != n:
        h = jnp.pad(h, ((0, n_pad - n), (0, 0)))

    flat = []
    for w, b in padded_params:
        flat.extend((w, b))

    kernel = functools.partial(_fused_mlp_kernel, n_layers=n_layers)

    in_specs = [pl.BlockSpec((tile_n, f_pad), lambda i: (i, 0))]
    for w, b in padded_params:
        # Constant index_map -> weights/biases DMA'd once, stay resident in VMEM.
        in_specs.append(pl.BlockSpec(w.shape, lambda i: (0, 0)))
        in_specs.append(pl.BlockSpec(b.shape, lambda i: (0, 0)))

    out_padded = pl.pallas_call(
        kernel,
        out_shape=jax.ShapeDtypeStruct((n_pad, out_pad), jnp.float32),
        grid=(n_pad // tile_n,),
        in_specs=in_specs,
        out_specs=pl.BlockSpec((tile_n, out_pad), lambda i: (i, 0)),
        compiler_params=pltpu.CompilerParams(
            dimension_semantics=("parallel",)),   # 2 TCs on v7x; no-op v5e/v6e
    )(h, *flat)

    # TODO(synk): downstream consumers could take the padded (n_pad, out_pad)
    # buffer directly and skip this slice; kept for exact nn.Module semantics.
    return out_padded[:n, :out_size]


# Pure-JAX reference (f32 everywhere) for correctness checking.
def reference(x, params):
    h = x.reshape(x.shape[0], -1)
    for i, (w, b) in enumerate(params):
        h = h @ w + b
        if i < len(params) - 1:
            h = jnp.maximum(h, 0.0)
    return jax.nn.softmax(h, axis=1)


# ---------------------------------------------------------------------------
# Main
# ---------------------------------------------------------------------------
if __name__ == "__main__":
    key = jax.random.PRNGKey(0)

    N, C, H, W = 2, 4, 16, 16
    in_size = C * H * W          # 1024
    hidden_sizes = [32, 32]
    out_size = 10

    k_x, k_p = jax.random.split(key)
    x = jax.random.normal(k_x, (N, C, H, W), dtype=jnp.float32)

    params = init_params(k_p, in_size, out_size, hidden_sizes)
    padded = pad_params(params, in_size)

    out = forward(x, padded, out_size)
    out = jax.block_until_ready(out)

    assert out.shape == (N, out_size)

    # Exact softmax normalization (explicit divide in the kernel epilogue).
    row_sums = jnp.sum(out, axis=1)
    assert bool(jnp.all(jnp.abs(row_sums - 1.0) < 1e-3))

    # Match the f32 reference within bf16-matmul tolerance.
    ref = reference(x, params)
    assert bool(jnp.max(jnp.abs(out - ref)) < 3e-2)

    print("KERNEL_OK")
</pallas_src>

<mosaic_0001>
module attributes {stable_mosaic.version = 11 : i64} {
  func.func @_fused_mlp_kernel(%arg0: i32, %arg1: memref<8x1024xbf16, #tpu.memory_space<vmem>>, %arg2: memref<1024x128xbf16, #tpu.memory_space<vmem>>, %arg3: memref<1x128xf32, #tpu.memory_space<vmem>>, %arg4: memref<128x128xbf16, #tpu.memory_space<vmem>>, %arg5: memref<1x128xf32, #tpu.memory_space<vmem>>, %arg6: memref<128x128xbf16, #tpu.memory_space<vmem>>, %arg7: memref<1x128xf32, #tpu.memory_space<vmem>>, %arg8: memref<8x128xf32, #tpu.memory_space<vmem>>) attributes {dimension_semantics = [#tpu.dimension_semantics<parallel>], iteration_bounds = array<i64: 1>, scalar_prefetch = 0 : i64, scratch_operands = 0 : i64, tpu.core_type = #tpu.core_type<tc>, window_params = [{transform_indices = @transform_0, window_bounds = array<i64: 8, 1024>}, {pipeline_mode = #tpu.pipeline_mode<synchronous>, transform_indices = @transform_1, window_bounds = array<i64: 1024, 128>}, {pipeline_mode = #tpu.pipeline_mode<synchronous>, transform_indices = @transform_2, window_bounds = array<i64: 1, 128>}, {pipeline_mode = #tpu.pipeline_mode<synchronous>, transform_indices = @transform_3, window_bounds = array<i64: 128, 128>}, {pipeline_mode = #tpu.pipeline_mode<synchronous>, transform_indices = @transform_4, window_bounds = array<i64: 1, 128>}, {pipeline_mode = #tpu.pipeline_mode<synchronous>, transform_indices = @transform_5, window_bounds = array<i64: 128, 128>}, {pipeline_mode = #tpu.pipeline_mode<synchronous>, transform_indices = @transform_6, window_bounds = array<i64: 1, 128>}, {transform_indices = @transform_7, window_bounds = array<i64: 8, 128>}]} {
    %c0 = arith.constant 0 : index
    %c0_0 = arith.constant 0 : index
    %0 = vector.load %arg1[%c0, %c0_0] : memref<8x1024xbf16, #tpu.memory_space<vmem>>, vector<8x1024xbf16>
    %c0_1 = arith.constant 0 : index
    %c0_2 = arith.constant 0 : index
    %1 = vector.load %arg2[%c0_1, %c0_2] : memref<1024x128xbf16, #tpu.memory_space<vmem>>, vector<1024x128xbf16>
    %c0_3 = arith.constant 0 : index
    %c0_4 = arith.constant 0 : index
    %2 = vector.load %arg3[%c0_3, %c0_4] : memref<1x128xf32, #tpu.memory_space<vmem>>, vector<1x128xf32>
    %cst = arith.constant dense<0.000000e+00> : vector<8x128xf32>
    %3 = tpu.matmul %0, %1, %cst {dimension_numbers = #tpu.dot_dimension_numbers<[1], [0], [0], [1], [0, 0, 1, 1], [], []>} : vector<8x1024xbf16>, vector<1024x128xbf16>, vector<8x128xf32> -> vector<8x128xf32>
    %4 = vector.broadcast %2 : vector<1x128xf32> to vector<8x128xf32>
    %5 = arith.addf %3, %4 : vector<8x128xf32>
    %cst_5 = arith.constant 0.000000e+00 : f32
    %6 = vector.broadcast %cst_5 : f32 to vector<8x128xf32>
    %7 = arith.maximumf %5, %6 : vector<8x128xf32>
    %c0_6 = arith.constant 0 : index
    %c0_7 = arith.constant 0 : index
    %8 = vector.load %arg4[%c0_6, %c0_7] : memref<128x128xbf16, #tpu.memory_space<vmem>>, vector<128x128xbf16>
    %c0_8 = arith.constant 0 : index
    %c0_9 = arith.constant 0 : index
    %9 = vector.load %arg5[%c0_8, %c0_9] : memref<1x128xf32, #tpu.memory_space<vmem>>, vector<1x128xf32>
    %10 = arith.truncf %7 : vector<8x128xf32> to vector<8x128xbf16>
    %cst_10 = arith.constant dense<0.000000e+00> : vector<8x128xf32>
    %11 = tpu.matmul %10, %8, %cst_10 {dimension_numbers = #tpu.dot_dimension_numbers<[1], [0], [0], [1], [0, 0, 1, 1], [], []>} : vector<8x128xbf16>, vector<128x128xbf16>, vector<8x128xf32> -> vector<8x128xf32>
    %12 = vector.broadcast %9 : vector<1x128xf32> to vector<8x128xf32>
    %13 = arith.addf %11, %12 : vector<8x128xf32>
    %cst_11 = arith.constant 0.000000e+00 : f32
    %14 = vector.broadcast %cst_11 : f32 to vector<8x128xf32>
    %15 = arith.maximumf %13, %14 : vector<8x128xf32>
    %c0_12 = arith.constant 0 : index
    %c0_13 = arith.constant 0 : index
    %16 = vector.load %arg6[%c0_12, %c0_13] : memref<128x128xbf16, #tpu.memory_space<vmem>>, vector<128x128xbf16>
    %c0_14 = arith.constant 0 : index
    %c0_15 = arith.constant 0 : index
    %17 = vector.load %arg7[%c0_14, %c0_15] : memref<1x128xf32, #tpu.memory_space<vmem>>, vector<1x128xf32>
    %18 = arith.truncf %15 : vector<8x128xf32> to vector<8x128xbf16>
    %cst_16 = arith.constant dense<0.000000e+00> : vector<8x128xf32>
    %19 = tpu.matmul %18, %16, %cst_16 {dimension_numbers = #tpu.dot_dimension_numbers<[1], [0], [0], [1], [0, 0, 1, 1], [], []>} : vector<8x128xbf16>, vector<128x128xbf16>, vector<8x128xf32> -> vector<8x128xf32>
    %20 = vector.broadcast %17 : vector<1x128xf32> to vector<8x128xf32>
    %21 = arith.addf %19, %20 : vector<8x128xf32>
    %cst_17 = arith.constant dense<0xFF800000> : vector<8xf32>
    %22 = vector.multi_reduction <maximumf>, %21, %cst_17 [1] : vector<8x128xf32> to vector<8xf32>
    %23 = vector.shape_cast %22 : vector<8xf32> to vector<8x1xf32>
    %24 = vector.broadcast %23 : vector<8x1xf32> to vector<8x128xf32>
    %25 = arith.subf %21, %24 : vector<8x128xf32>
    %26 = math.exp %25 : vector<8x128xf32>
    %cst_18 = arith.constant dense<0.000000e+00> : vector<8xf32>
    %27 = vector.multi_reduction <add>, %26, %cst_18 [1] : vector<8x128xf32> to vector<8xf32>
    %28 = vector.shape_cast %27 : vector<8xf32> to vector<8x1xf32>
    %29 = vector.broadcast %28 : vector<8x1xf32> to vector<8x128xf32>
    %30 = arith.divf %26, %29 : vector<8x128xf32>
    %c0_19 = arith.constant 0 : index
    %c0_20 = arith.constant 0 : index
    %31 = vector.load %arg8[%c0_19, %c0_20] : memref<8x128xf32, #tpu.memory_space<vmem>>, vector<8x128xf32>
    tpu.vector_store %arg8[%c0_19, %c0_20], %30 {strides = array<i32>} : memref<8x128xf32, #tpu.memory_space<vmem>>, vector<8x128xf32>,
    return
  }
  func.func @transform_0(%arg0: i32) -> (i32, i32) {
    %c0_i32 = arith.constant 0 : i32
    %c0_i32_0 = arith.constant 0 : i32
    return %arg0, %c0_i32 : i32, i32
  }
  func.func @transform_1(%arg0: i32) -> (i32, i32) {
    %c0_i32 = arith.constant 0 : i32
    %c0_i32_0 = arith.constant 0 : i32
    %c0_i32_1 = arith.constant 0 : i32
    return %c0_i32, %c0_i32_0 : i32, i32
  }
  func.func @transform_2(%arg0: i32) -> (i32, i32) {
    %c0_i32 = arith.constant 0 : i32
    %c0_i32_0 = arith.constant 0 : i32
    %c0_i32_1 = arith.constant 0 : i32
    return %c0_i32, %c0_i32_0 : i32, i32
  }
  func.func @transform_3(%arg0: i32) -> (i32, i32) {
    %c0_i32 = arith.constant 0 : i32
    %c0_i32_0 = arith.constant 0 : i32
    %c0_i32_1 = arith.constant 0 : i32
    return %c0_i32, %c0_i32_0 : i32, i32
  }
  func.func @transform_4(%arg0: i32) -> (i32, i32) {
    %c0_i32 = arith.constant 0 : i32
    %c0_i32_0 = arith.constant 0 : i32
    %c0_i32_1 = arith.constant 0 : i32
    return %c0_i32, %c0_i32_0 : i32, i32
  }
  func.func @transform_5(%arg0: i32) -> (i32, i32) {
    %c0_i32 = arith.constant 0 : i32
    %c0_i32_0 = arith.constant 0 : i32
    %c0_i32_1 = arith.constant 0 : i32
    return %c0_i32, %c0_i32_0 : i32, i32
  }
  func.func @transform_6(%arg0: i32) -> (i32, i32) {
    %c0_i32 = arith.constant 0 : i32
    %c0_i32_0 = arith.constant 0 : i32
    %c0_i32_1 = arith.constant 0 : i32
    return %c0_i32, %c0_i32_0 : i32, i32
  }
  func.func @transform_7(%arg0: i32) -> (i32, i32) {
    %c0_i32 = arith.constant 0 : i32
    %c0_i32_0 = arith.constant 0 : i32
    return %arg0, %c0_i32 : i32, i32
  }
}

</mosaic_0001>

<llo_original>
// kernel: forward.1
$region0: #{forward.1}
  #allocation0 [shape = 'u32[]', space=smem, size = 0x4, offset = 0x4, fixed_abs, tag = 'smem constant byte address 0x4 - core index']
  #allocation1 [shape = 'u32[144,128]{1,0:T(1,128)}', space=vmem, size = 0x12000, scoped, tag = 'internal scratch']
  %s0 = inlined_call_operand.vmem [shape: bf16[8,1024], index: 0, kind: input, shape index: {}]
  %s1 = inlined_call_operand.hbm [shape: bf16[1024,128], index: 1, kind: input, shape index: {}]
  %s2 = inlined_call_operand.vmem [shape: f32[1,128], index: 2, kind: input, shape index: {}]
  %s3 = inlined_call_operand.vmem [shape: bf16[128,128], index: 3, kind: input, shape index: {}]
  %s4 = inlined_call_operand.vmem [shape: f32[1,128], index: 4, kind: input, shape index: {}]
  %s5 = inlined_call_operand.vmem [shape: bf16[128,128], index: 5, kind: input, shape index: {}]
  %s6 = inlined_call_operand.vmem [shape: f32[1,128], index: 6, kind: input, shape index: {}]
  %s7 = inlined_call_operand.vmem [shape: f32[8,128], index: 7, kind: output, shape index: {}]
  %s8 = sld [smem:[#allocation0]]
  $region42: #{forward.1} parent=0
    _
  %s10 = ssub.s32 1, %s8
  %s11 = scalar_select 0, %s10, %s8
  $region1: #{forward.1} parent=0
    #allocation2 [shape = 'u8[262144]{0}', space=vmem, size = 0x40000, scoped, tag = 'input window, operand 1, single buffered']
    #allocation3 [shape = 's32[1]{0}', space=sflag, size = 0x4, scoped, tag = 'scoped memory for forward.1']
    %12 = vsyncpa [#allocation3], 0
    // Predicated region
    $region2: #{forward.1} parent=1 // pred_check
      _
    $region3: #{forward.1} parent=1 // pred_check_branch
      %14 = sbr.rel (0) target = $region5
    $region4: #{forward.1} parent=1 // pred_region
      _
    $region5: #{forward.1} parent=1 // pred_fallthru
      _
    // Predicated region
    $region6: #{forward.1} parent=1 // pred_check
      _
    $region7: #{forward.1} parent=1 // pred_check_branch
      %16 = sbr.rel (0) target = $region9
    $region8: #{forward.1} parent=1 // pred_region
      %s18 = ssub.s32 8192, 8192
      %19 = vsyncadd [#allocation3], %s18
      %s20 = sshll.u32 [#allocation2], 4
      %s21 = int_to_ptr.vmem [resolvable:$true] %s20
      %26 = dma.hbm_to_vmem [thread:$0]  %s1, 8192, %s21, [#allocation3], 64, 64, 4
    $region9: #{forward.1} parent=1 // pred_fallthru
      _
    // Predicated region
    $region10: #{forward.1} parent=1 // pred_check
      _
    $region11: #{forward.1} parent=1 // pred_check_branch
      %28 = sbr.rel (0) target = $region13
    $region12: #{forward.1} parent=1 // pred_region
      _
    $region13: #{forward.1} parent=1 // pred_fallthru
      _
    // Predicated region
    $region14: #{forward.1} parent=1 // pred_check
      _
    $region15: #{forward.1} parent=1 // pred_check_branch
      %30 = sbr.rel (0) target = $region17
    $region16: #{forward.1} parent=1 // pred_region
      _
    $region17: #{forward.1} parent=1 // pred_fallthru
      _
    // Predicated region
    $region18: #{forward.1} parent=1 // pred_check
      _
    $region19: #{forward.1} parent=1 // pred_check_branch
      %32 = sbr.rel (0) target = $region21
    $region20: #{forward.1} parent=1 // pred_region
      _
    $region21: #{forward.1} parent=1 // pred_fallthru
      _
    // Predicated region
    $region22: #{forward.1} parent=1 // pred_check
      _
    $region23: #{forward.1} parent=1 // pred_check_branch
      %34 = sbr.rel (0) target = $region25
    $region24: #{forward.1} parent=1 // pred_region
      _
    $region25: #{forward.1} parent=1 // pred_fallthru
      _
    // Predicated region
    $region26: #{forward.1} parent=1 // pred_check
      _
    $region27: #{forward.1} parent=1 // pred_check_branch
      %36 = sbr.rel (0) target = $region29
    $region28: #{forward.1} parent=1 // pred_region
      _
    $region29: #{forward.1} parent=1 // pred_fallthru
      _
    // Predicated region
    $region30: #{forward.1} parent=1 // pred_check
      _
    $region31: #{forward.1} parent=1 // pred_check_branch
      %38 = sbr.rel (0) target = $region33
    $region32: #{forward.1} parent=1 // pred_region
      %39 = dma.done [#allocation3], 8192
    $region33: #{forward.1} parent=1 // pred_fallthru
      _
    %v41 = vld [vmem:[%s0] sm:$0xff]
    %v42 = vld [vmem:[%s0 + $0x8] sm:$0xff]
    %v43 = vld [vmem:[%s0 + $0x10] sm:$0xff]
    %v44 = vld [vmem:[%s0 + $0x18] sm:$0xff]
    %v45 = vld [vmem:[#allocation2] sm:$0xf]
    %v46 = vld [vmem:[#allocation2 + $0x4] sm:$0xf]
    %v47 = vld [vmem:[#allocation2 + $0x8] sm:$0xf]
    %v48 = vld [vmem:[#allocation2 + $0xc] sm:$0xf]
    %v49 = vld [vmem:[#allocation2 + $0x10] sm:$0xf]
    %v50 = vld [vmem:[#allocation2 + $0x14] sm:$0xf]
    %v51 = vld [vmem:[#allocation2 + $0x18] sm:$0xf]
    %v52 = vld [vmem:[#allocation2 + $0x1c] sm:$0xf]
    %v53 = vld [vmem:[#allocation2 + $0x20] sm:$0xf]
    %v54 = vld [vmem:[#allocation2 + $0x24] sm:$0xf]
    %v55 = vld [vmem:[#allocation2 + $0x28] sm:$0xf]
    %v56 = vld [vmem:[#allocation2 + $0x2c] sm:$0xf]
    %v57 = vld [vmem:[#allocation2 + $0x30] sm:$0xf]
    %v58 = vld [vmem:[#allocation2 + $0x34] sm:$0xf]
    %v59 = vld [vmem:[#allocation2 + $0x38] sm:$0xf]
    %v60 = vld [vmem:[#allocation2 + $0x3c] sm:$0xf]
    %v61 = vld [vmem:[#allocation2 + $0x40] sm:$0xf]
    %v62 = vld [vmem:[#allocation2 + $0x44] sm:$0xf]
    %v63 = vld [vmem:[#allocation2 + $0x48] sm:$0xf]
    %v64 = vld [vmem:[#allocation2 + $0x4c] sm:$0xf]
    %v65 = vld [vmem:[#allocation2 + $0x50] sm:$0xf]
    %v66 = vld [vmem:[#allocation2 + $0x54] sm:$0xf]
    %v67 = vld [vmem:[#allocation2 + $0x58] sm:$0xf]
    %v68 = vld [vmem:[#allocation2 + $0x5c] sm:$0xf]
    %v69 = vld [vmem:[#allocation2 + $0x60] sm:$0xf]
    %v70 = vld [vmem:[#allocation2 + $0x64] sm:$0xf]
    %v71 = vld [vmem:[#allocation2 + $0x68] sm:$0xf]
    %v72 = vld [vmem:[#allocation2 + $0x6c] sm:$0xf]
    %v73 = vld [vmem:[#allocation2 + $0x70] sm:$0xf]
    %v74 = vld [vmem:[#allocation2 + $0x74] sm:$0xf]
    %v75 = vld [vmem:[#allocation2 + $0x78] sm:$0xf]
    %v76 = vld [vmem:[#allocation2 + $0x7c] sm:$0xf]
    %v77 = vld [vmem:[#allocation2 + $0x80] sm:$0xf]
    %v78 = vld [vmem:[#allocation2 + $0x84] sm:$0xf]
    %v79 = vld [vmem:[#allocation2 + $0x88] sm:$0xf]
    %v80 = vld [vmem:[#allocation2 + $0x8c] sm:$0xf]
    %v81 = vld [vmem:[#allocation2 + $0x90] sm:$0xf]
    %v82 = vld [vmem:[#allocation2 + $0x94] sm:$0xf]
    %v83 = vld [vmem:[#allocation2 + $0x98] sm:$0xf]
    %v84 = vld [vmem:[#allocation2 + $0x9c] sm:$0xf]
    %v85 = vld [vmem:[#allocation2 + $0xa0] sm:$0xf]
    %v86 = vld [vmem:[#allocation2 + $0xa4] sm:$0xf]
    %v87 = vld [vmem:[#allocation2 + $0xa8] sm:$0xf]
    %v88 = vld [vmem:[#allocation2 + $0xac] sm:$0xf]
    %v89 = vld [vmem:[#allocation2 + $0xb0] sm:$0xf]
    %v90 = vld [vmem:[#allocation2 + $0xb4] sm:$0xf]
    %v91 = vld [vmem:[#allocation2 + $0xb8] sm:$0xf]
    %v92 = vld [vmem:[#allocation2 + $0xbc] sm:$0xf]
    %v93 = vld [vmem:[#allocation2 + $0xc0] sm:$0xf]
    %v94 = vld [vmem:[#allocation2 + $0xc4] sm:$0xf]
    %v95 = vld [vmem:[#allocation2 + $0xc8] sm:$0xf]
    %v96 = vld [vmem:[#allocation2 + $0xcc] sm:$0xf]
    %v97 = vld [vmem:[#allocation2 + $0xd0] sm:$0xf]
    %v98 = vld [vmem:[#allocation2 + $0xd4] sm:$0xf]
    %v99 = vld [vmem:[#allocation2 + $0xd8] sm:$0xf]
    %v100 = vld [vmem:[#allocation2 + $0xdc] sm:$0xf]
    %v101 = vld [vmem:[#allocation2 + $0xe0] sm:$0xf]
    %v102 = vld [vmem:[#allocation2 + $0xe4] sm:$0xf]
    %v103 = vld [vmem:[#allocation2 + $0xe8] sm:$0xf]
    %v104 = vld [vmem:[#allocation2 + $0xec] sm:$0xf]
    %v105 = vld [vmem:[#allocation2 + $0xf0] sm:$0xf]
    %v106 = vld [vmem:[#allocation2 + $0xf4] sm:$0xf]
    %v107 = vld [vmem:[#allocation2 + $0xf8] sm:$0xf]
    %v108 = vld [vmem:[#allocation2 + $0xfc] sm:$0xf]
    %v109 = vld [vmem:[#allocation2 + $0x100] sm:$0xf]
    %v110 = vld [vmem:[#allocation2 + $0x104] sm:$0xf]
    %v111 = vld [vmem:[#allocation2 + $0x108] sm:$0xf]
    %v112 = vld [vmem:[#allocation2 + $0x10c] sm:$0xf]
    %v113 = vld [vmem:[#allocation2 + $0x110] sm:$0xf]
    %v114 = vld [vmem:[#allocation2 + $0x114] sm:$0xf]
    %v115 = vld [vmem:[#allocation2 + $0x118] sm:$0xf]
    %v116 = vld [vmem:[#allocation2 + $0x11c] sm:$0xf]
    %v117 = vld [vmem:[#allocation2 + $0x120] sm:$0xf]
    %v118 = vld [vmem:[#allocation2 + $0x124] sm:$0xf]
    %v119 = vld [vmem:[#allocation2 + $0x128] sm:$0xf]
    %v120 = vld [vmem:[#allocation2 + $0x12c] sm:$0xf]
    %v121 = vld [vmem:[#allocation2 + $0x130] sm:$0xf]
    %v122 = vld [vmem:[#allocation2 + $0x134] sm:$0xf]
    %v123 = vld [vmem:[#allocation2 + $0x138] sm:$0xf]
    %v124 = vld [vmem:[#allocation2 + $0x13c] sm:$0xf]
    %v125 = vld [vmem:[#allocation2 + $0x140] sm:$0xf]
    %v126 = vld [vmem:[#allocation2 + $0x144] sm:$0xf]
    %v127 = vld [vmem:[#allocation2 + $0x148] sm:$0xf]
    %v128 = vld [vmem:[#allocation2 + $0x14c] sm:$0xf]
    %v129 = vld [vmem:[#allocation2 + $0x150] sm:$0xf]
    %v130 = vld [vmem:[#allocation2 + $0x154] sm:$0xf]
    %v131 = vld [vmem:[#allocation2 + $0x158] sm:$0xf]
    %v132 = vld [vmem:[#allocation2 + $0x15c] sm:$0xf]
    %v133 = vld [vmem:[#allocation2 + $0x160] sm:$0xf]
    %v134 = vld [vmem:[#allocation2 + $0x164] sm:$0xf]
    %v135 = vld [vmem:[#allocation2 + $0x168] sm:$0xf]
    %v136 = vld [vmem:[#allocation2 + $0x16c] sm:$0xf]
    %v137 = vld [vmem:[#allocation2 + $0x170] sm:$0xf]
    %v138 = vld [vmem:[#allocation2 + $0x174] sm:$0xf]
    %v139 = vld [vmem:[#allocation2 + $0x178] sm:$0xf]
    %v140 = vld [vmem:[#allocation2 + $0x17c] sm:$0xf]
    %v141 = vld [vmem:[#allocation2 + $0x180] sm:$0xf]
    %v142 = vld [vmem:[#allocation2 + $0x184] sm:$0xf]
    %v143 = vld [vmem:[#allocation2 + $0x188] sm:$0xf]
    %v144 = vld [vmem:[#allocation2 + $0x18c] sm:$0xf]
    %v145 = vld [vmem:[#allocation2 + $0x190] sm:$0xf]
    %v146 = vld [vmem:[#allocation2 + $0x194] sm:$0xf]
    %v147 = vld [vmem:[#allocation2 + $0x198] sm:$0xf]
    %v148 = vld [vmem:[#allocation2 + $0x19c] sm:$0xf]
    %v149 = vld [vmem:[#allocation2 + $0x1a0] sm:$0xf]
    %v150 = vld [vmem:[#allocation2 + $0x1a4] sm:$0xf]
    %v151 = vld [vmem:[#allocation2 + $0x1a8] sm:$0xf]
    %v152 = vld [vmem:[#allocation2 + $0x1ac] sm:$0xf]
    %v153 = vld [vmem:[#allocation2 + $0x1b0] sm:$0xf]
    %v154 = vld [vmem:[#allocation2 + $0x1b4] sm:$0xf]
    %v155 = vld [vmem:[#allocation2 + $0x1b8] sm:$0xf]
    %v156 = vld [vmem:[#allocation2 + $0x1bc] sm:$0xf]
    %v157 = vld [vmem:[#allocation2 + $0x1c0] sm:$0xf]
    %v158 = vld [vmem:[#allocation2 + $0x1c4] sm:$0xf]
    %v159 = vld [vmem:[#allocation2 + $0x1c8] sm:$0xf]
    %v160 = vld [vmem:[#allocation2 + $0x1cc] sm:$0xf]
    %v161 = vld [vmem:[#allocation2 + $0x1d0] sm:$0xf]
    %v162 = vld [vmem:[#allocation2 + $0x1d4] sm:$0xf]
    %v163 = vld [vmem:[#allocation2 + $0x1d8] sm:$0xf]
    %v164 = vld [vmem:[#allocation2 + $0x1dc] sm:$0xf]
    %v165 = vld [vmem:[#allocation2 + $0x1e0] sm:$0xf]
    %v166 = vld [vmem:[#allocation2 + $0x1e4] sm:$0xf]
    %v167 = vld [vmem:[#allocation2 + $0x1e8] sm:$0xf]
    %v168 = vld [vmem:[#allocation2 + $0x1ec] sm:$0xf]
    %v169 = vld [vmem:[#allocation2 + $0x1f0] sm:$0xf]
    %v170 = vld [vmem:[#allocation2 + $0x1f4] sm:$0xf]
    %v171 = vld [vmem:[#allocation2 + $0x1f8] sm:$0xf]
    %v172 = vld [vmem:[#allocation2 + $0x1fc] sm:$0xf]
    %v173 = vld [vmem:[%s2] sm:$0x1]
    %v175 = vlaneseq
    %v176 = vshrl.u32 %v175, 7
    %v177 = vsub.s32 0, %v176
    %v178 = vrot.slane %v173, %v177
    %v184 = vunpack.c.l.b16 %v41
    %v185 = vunpack.c.h.b16 %v41
    %v186 = vunpack.c.l.b16 %v42
    %v187 = vunpack.c.h.b16 %v42
    %v188 = vunpack.c.l.b16 %v43
    %v189 = vunpack.c.h.b16 %v43
    %v190 = vunpack.c.l.b16 %v44
    %v191 = vunpack.c.h.b16 %v44
    %v192 = vpack.c.b16 %v184, %v184
    %v193 = vpack.c.b16 %v185, %v185
    %v194 = vpack.c.b16 %v186, %v186
    %v195 = vpack.c.b16 %v187, %v187
    %v196 = vpack.c.b16 %v188, %v188
    %v197 = vpack.c.b16 %v189, %v189
    %v198 = vpack.c.b16 %v190, %v190
    %v199 = vpack.c.b16 %v191, %v191
    %v336 = vunpack.c.l.b16 %v45
    %v337 = vunpack.c.l.b16 %v46
    %v338 = vunpack.c.l.b16 %v47
    %v339 = vunpack.c.l.b16 %v48
    %v340 = vunpack.c.l.b16 %v49
    %v341 = vunpack.c.l.b16 %v50
    %v342 = vunpack.c.l.b16 %v51
    %v343 = vunpack.c.l.b16 %v52
    %v344 = vunpack.c.l.b16 %v53
    %v345 = vunpack.c.l.b16 %v54
    %v346 = vunpack.c.l.b16 %v55
    %v347 = vunpack.c.l.b16 %v56
    %v348 = vunpack.c.l.b16 %v57
    %v349 = vunpack.c.l.b16 %v58
    %v350 = vunpack.c.l.b16 %v59
    %v351 = vunpack.c.l.b16 %v60
    %v352 = vunpack.c.l.b16 %v61
    %v353 = vunpack.c.l.b16 %v62
    %v354 = vunpack.c.l.b16 %v63
    %v355 = vunpack.c.l.b16 %v64
    %v356 = vunpack.c.l.b16 %v65
    %v357 = vunpack.c.l.b16 %v66
    %v358 = vunpack.c.l.b16 %v67
    %v359 = vunpack.c.l.b16 %v68
    %v360 = vunpack.c.l.b16 %v69
    %v361 = vunpack.c.l.b16 %v70
    %v362 = vunpack.c.l.b16 %v71
    %v363 = vunpack.c.l.b16 %v72
    %v364 = vunpack.c.l.b16 %v73
    %v365 = vunpack.c.l.b16 %v74
    %v366 = vunpack.c.l.b16 %v75
    %v367 = vunpack.c.l.b16 %v76
    %v368 = vunpack.c.l.b16 %v77
    %v369 = vunpack.c.l.b16 %v78
    %v370 = vunpack.c.l.b16 %v79
    %v371 = vunpack.c.l.b16 %v80
    %v372 = vunpack.c.l.b16 %v81
    %v373 = vunpack.c.l.b16 %v82
    %v374 = vunpack.c.l.b16 %v83
    %v375 = vunpack.c.l.b16 %v84
    %v376 = vunpack.c.l.b16 %v85
    %v377 = vunpack.c.l.b16 %v86
    %v378 = vunpack.c.l.b16 %v87
    %v379 = vunpack.c.l.b16 %v88
    %v380 = vunpack.c.l.b16 %v89
    %v381 = vunpack.c.l.b16 %v90
    %v382 = vunpack.c.l.b16 %v91
    %v383 = vunpack.c.l.b16 %v92
    %v384 = vunpack.c.l.b16 %v93
    %v385 = vunpack.c.l.b16 %v94
    %v386 = vunpack.c.l.b16 %v95
    %v387 = vunpack.c.l.b16 %v96
    %v388 = vunpack.c.l.b16 %v97
    %v389 = vunpack.c.l.b16 %v98
    %v390 = vunpack.c.l.b16 %v99
    %v391 = vunpack.c.l.b16 %v100
    %v392 = vunpack.c.l.b16 %v101
    %v393 = vunpack.c.l.b16 %v102
    %v394 = vunpack.c.l.b16 %v103
    %v395 = vunpack.c.l.b16 %v104
    %v396 = vunpack.c.l.b16 %v105
    %v397 = vunpack.c.l.b16 %v106
    %v398 = vunpack.c.l.b16 %v107
    %v399 = vunpack.c.l.b16 %v108
    %v400 = vunpack.c.l.b16 %v109
    %v401 = vunpack.c.l.b16 %v110
    %v402 = vunpack.c.l.b16 %v111
    %v403 = vunpack.c.l.b16 %v112
    %v404 = vunpack.c.l.b16 %v113
    %v405 = vunpack.c.l.b16 %v114
    %v406 = vunpack.c.l.b16 %v115
    %v407 = vunpack.c.l.b16 %v116
    %v408 = vunpack.c.l.b16 %v117
    %v409 = vunpack.c.l.b16 %v118
    %v410 = vunpack.c.l.b16 %v119
    %v411 = vunpack.c.l.b16 %v120
    %v412 = vunpack.c.l.b16 %v121
    %v413 = vunpack.c.l.b16 %v122
    %v414 = vunpack.c.l.b16 %v123
    %v415 = vunpack.c.l.b16 %v124
    %v416 = vunpack.c.l.b16 %v125
    %v417 = vunpack.c.l.b16 %v126
    %v418 = vunpack.c.l.b16 %v127
    %v419 = vunpack.c.l.b16 %v128
    %v420 = vunpack.c.l.b16 %v129
    %v421 = vunpack.c.l.b16 %v130
    %v422 = vunpack.c.l.b16 %v131
    %v423 = vunpack.c.l.b16 %v132
    %v424 = vunpack.c.l.b16 %v133
    %v425 = vunpack.c.l.b16 %v134
    %v426 = vunpack.c.l.b16 %v135
    %v427 = vunpack.c.l.b16 %v136
    %v428 = vunpack.c.l.b16 %v137
    %v429 = vunpack.c.l.b16 %v138
    %v430 = vunpack.c.l.b16 %v139
    %v431 = vunpack.c.l.b16 %v140
    %v432 = vunpack.c.l.b16 %v141
    %v433 = vunpack.c.l.b16 %v142
    %v434 = vunpack.c.l.b16 %v143
    %v435 = vunpack.c.l.b16 %v144
    %v436 = vunpack.c.l.b16 %v145
    %v437 = vunpack.c.l.b16 %v146
    %v438 = vunpack.c.l.b16 %v147
    %v439 = vunpack.c.l.b16 %v148
    %v440 = vunpack.c.l.b16 %v149
    %v441 = vunpack.c.l.b16 %v150
    %v442 = vunpack.c.l.b16 %v151
    %v443 = vunpack.c.l.b16 %v152
    %v444 = vunpack.c.l.b16 %v153
    %v445 = vunpack.c.l.b16 %v154
    %v446 = vunpack.c.l.b16 %v155
    %v447 = vunpack.c.l.b16 %v156
    %v448 = vunpack.c.l.b16 %v157
    %v449 = vunpack.c.l.b16 %v158
    %v450 = vunpack.c.l.b16 %v159
    %v451 = vunpack.c.l.b16 %v160
    %v452 = vunpack.c.l.b16 %v161
    %v453 = vunpack.c.l.b16 %v162
    %v454 = vunpack.c.l.b16 %v163
    %v455 = vunpack.c.l.b16 %v164
    %v456 = vunpack.c.l.b16 %v165
    %v457 = vunpack.c.l.b16 %v166
    %v458 = vunpack.c.l.b16 %v167
    %v459 = vunpack.c.l.b16 %v168
    %v460 = vunpack.c.l.b16 %v169
    %v461 = vunpack.c.l.b16 %v170
    %v462 = vunpack.c.l.b16 %v171
    %v463 = vunpack.c.l.b16 %v172
    %v464 = vpack.c.b16 %v337, %v336
    %v465 = vpack.c.b16 %v339, %v338
    %v466 = vpack.c.b16 %v341, %v340
    %v467 = vpack.c.b16 %v343, %v342
    %v468 = vpack.c.b16 %v345, %v344
    %v469 = vpack.c.b16 %v347, %v346
    %v470 = vpack.c.b16 %v349, %v348
    %v471 = vpack.c.b16 %v351, %v350
    %v472 = vpack.c.b16 %v353, %v352
    %v473 = vpack.c.b16 %v355, %v354
    %v474 = vpack.c.b16 %v357, %v356
    %v475 = vpack.c.b16 %v359, %v358
    %v476 = vpack.c.b16 %v361, %v360
    %v477 = vpack.c.b16 %v363, %v362
    %v478 = vpack.c.b16 %v365, %v364
    %v479 = vpack.c.b16 %v367, %v366
    %v480 = vpack.c.b16 %v369, %v368
    %v481 = vpack.c.b16 %v371, %v370
    %v482 = vpack.c.b16 %v373, %v372
    %v483 = vpack.c.b16 %v375, %v374
    %v484 = vpack.c.b16 %v377, %v376
    %v485 = vpack.c.b16 %v379, %v378
    %v486 = vpack.c.b16 %v381, %v380
    %v487 = vpack.c.b16 %v383, %v382
    %v488 = vpack.c.b16 %v385, %v384
    %v489 = vpack.c.b16 %v387, %v386
    %v490 = vpack.c.b16 %v389, %v388
    %v491 = vpack.c.b16 %v391, %v390
    %v492 = vpack.c.b16 %v393, %v392
    %v493 = vpack.c.b16 %v395, %v394
    %v494 = vpack.c.b16 %v397, %v396
    %v495 = vpack.c.b16 %v399, %v398
    %v496 = vpack.c.b16 %v401, %v400
    %v497 = vpack.c.b16 %v403, %v402
    %v498 = vpack.c.b16 %v405, %v404
    %v499 = vpack.c.b16 %v407, %v406
    %v500 = vpack.c.b16 %v409, %v408
    %v501 = vpack.c.b16 %v411, %v410
    %v502 = vpack.c.b16 %v413, %v412
    %v503 = vpack.c.b16 %v415, %v414
    %v504 = vpack.c.b16 %v417, %v416
    %v505 = vpack.c.b16 %v419, %v418
    %v506 = vpack.c.b16 %v421, %v420
    %v507 = vpack.c.b16 %v423, %v422
    %v508 = vpack.c.b16 %v425, %v424
    %v509 = vpack.c.b16 %v427, %v426
    %v510 = vpack.c.b16 %v429, %v428
    %v511 = vpack.c.b16 %v431, %v430
    %v512 = vpack.c.b16 %v433, %v432
    %v513 = vpack.c.b16 %v435, %v434
    %v514 = vpack.c.b16 %v437, %v436
    %v515 = vpack.c.b16 %v439, %v438
    %v516 = vpack.c.b16 %v441, %v440
    %v517 = vpack.c.b16 %v443, %v442
    %v518 = vpack.c.b16 %v445, %v444
    %v519 = vpack.c.b16 %v447, %v446
    %v520 = vpack.c.b16 %v449, %v448
    %v521 = vpack.c.b16 %v451, %v450
    %v522 = vpack.c.b16 %v453, %v452
    %v523 = vpack.c.b16 %v455, %v454
    %v524 = vpack.c.b16 %v457, %v456
    %v525 = vpack.c.b16 %v459, %v458
    %v526 = vpack.c.b16 %v461, %v460
    %v527 = vpack.c.b16 %v463, %v462
    %592 = vmatprep.subr.bf16.mxu0 0
    %593 = vmatpush1.bf16.msra.mxu0 %v471
    %594 = vmatprep.subr.bf16.mxu0 0
    %595 = vmatpush1.bf16.msra.mxu0 %v470
    %596 = vmatprep.subr.bf16.mxu0 0
    %597 = vmatpush1.bf16.msra.mxu0 %v469
    %598 = vmatprep.subr.bf16.mxu0 0
    %599 = vmatpush1.bf16.msra.mxu0 %v468
    %600 = vmatprep.subr.bf16.mxu0 0
    %601 = vmatpush1.bf16.msra.mxu0 %v467
    %602 = vmatprep.subr.bf16.mxu0 0
    %603 = vmatpush1.bf16.msra.mxu0 %v466
    %604 = vmatprep.subr.bf16.mxu0 0
    %605 = vmatpush1.bf16.msra.mxu0 %v465
    %606 = vmatprep.subr.bf16.mxu0 0
    %607 = vmatpush1.bf16.msra.mxu0 %v464
    %608 = vmatprep.subr.bf16.mxu0 0
    %609 = vmatpush2.bf16.msra.mxu0 %v479
    %610 = vmatprep.subr.bf16.mxu0 0
    %611 = vmatpush2.bf16.msra.mxu0 %v478
    %612 = vmatprep.subr.bf16.mxu0 0
    %613 = vmatpush2.bf16.msra.mxu0 %v477
    %614 = vmatprep.subr.bf16.mxu0 0
    %615 = vmatpush2.bf16.msra.mxu0 %v476
    %616 = vmatprep.subr.bf16.mxu0 0
    %617 = vmatpush2.bf16.msra.mxu0 %v475
    %618 = vmatprep.subr.bf16.mxu0 0
    %619 = vmatpush2.bf16.msra.mxu0 %v474
    %620 = vmatprep.subr.bf16.mxu0 0
    %621 = vmatpush2.bf16.msra.mxu0 %v473
    %622 = vmatprep.subr.bf16.mxu0 0
    %623 = vmatpush2.bf16.msra.mxu0 %v472
    %624 = vmatprep.mubr.bf16.mxu0 %v193
    %625 = vmatmul.mubr.bf16.gmra.mxu0 %v192
    %v626 = vpop.f32.mrf.mxu0
    %v627 = vadd.f32 %v178, %v626
    %v628 = vpop.f32.mrf.mxu0
    %v629 = vpop.f32.mrf.mxu0
    %v630 = vpop.f32.mrf.mxu0
    %631 = vdwg.mxu0
    %632 = vmatprep.subr.bf16.mxu0 0
    %633 = vmatpush1.bf16.msra.mxu0 %v487
    %634 = vmatprep.subr.bf16.mxu0 0
    %635 = vmatpush1.bf16.msra.mxu0 %v486
    %636 = vmatprep.subr.bf16.mxu0 0
    %637 = vmatpush1.bf16.msra.mxu0 %v485
    %638 = vmatprep.subr.bf16.mxu0 0
    %639 = vmatpush1.bf16.msra.mxu0 %v484
    %640 = vmatprep.subr.bf16.mxu0 0
    %641 = vmatpush1.bf16.msra.mxu0 %v483
    %642 = vmatprep.subr.bf16.mxu0 0
    %643 = vmatpush1.bf16.msra.mxu0 %v482
    %644 = vmatprep.subr.bf16.mxu0 0
    %645 = vmatpush1.bf16.msra.mxu0 %v481
    %646 = vmatprep.subr.bf16.mxu0 0
    %647 = vmatpush1.bf16.msra.mxu0 %v480
    %648 = vmatprep.subr.bf16.mxu0 0
    %649 = vmatpush2.bf16.msra.mxu0 %v495
    %650 = vmatprep.subr.bf16.mxu0 0
    %651 = vmatpush2.bf16.msra.mxu0 %v494
    %652 = vmatprep.subr.bf16.mxu0 0
    %653 = vmatpush2.bf16.msra.mxu0 %v493
    %654 = vmatprep.subr.bf16.mxu0 0
    %655 = vmatpush2.bf16.msra.mxu0 %v492
    %656 = vmatprep.subr.bf16.mxu0 0
    %657 = vmatpush2.bf16.msra.mxu0 %v491
    %658 = vmatprep.subr.bf16.mxu0 0
    %659 = vmatpush2.bf16.msra.mxu0 %v490
    %660 = vmatprep.subr.bf16.mxu0 0
    %661 = vmatpush2.bf16.msra.mxu0 %v489
    %662 = vmatprep.subr.bf16.mxu0 0
    %663 = vmatpush2.bf16.msra.mxu0 %v488
    %664 = vmatprep.mubr.bf16.mxu0 %v195
    %665 = vmatmul.mubr.bf16.gmra.mxu0 %v194
    %v666 = vpop.f32.mrf.mxu0
    %v667 = vadd.f32 %v627, %v666
    %v668 = vpop.f32.mrf.mxu0
    %v669 = vpop.f32.mrf.mxu0
    %v670 = vpop.f32.mrf.mxu0
    %671 = vdwg.mxu0
    %672 = vmatprep.subr.bf16.mxu0 0
    %673 = vmatpush1.bf16.msra.mxu0 %v503
    %674 = vmatprep.subr.bf16.mxu0 0
    %675 = vmatpush1.bf16.msra.mxu0 %v502
    %676 = vmatprep.subr.bf16.mxu0 0
    %677 = vmatpush1.bf16.msra.mxu0 %v501
    %678 = vmatprep.subr.bf16.mxu0 0
    %679 = vmatpush1.bf16.msra.mxu0 %v500
    %680 = vmatprep.subr.bf16.mxu0 0
    %681 = vmatpush1.bf16.msra.mxu0 %v499
    %682 = vmatprep.subr.bf16.mxu0 0
    %683 = vmatpush1.bf16.msra.mxu0 %v498
    %684 = vmatprep.subr.bf16.mxu0 0
    %685 = vmatpush1.bf16.msra.mxu0 %v497
    %686 = vmatprep.subr.bf16.mxu0 0
    %687 = vmatpush1.bf16.msra.mxu0 %v496
    %688 = vmatprep.subr.bf16.mxu0 0
    %689 = vmatpush2.bf16.msra.mxu0 %v511
    %690 = vmatprep.subr.bf16.mxu0 0
    %691 = vmatpush2.bf16.msra.mxu0 %v510
    %692 = vmatprep.subr.bf16.mxu0 0
    %693 = vmatpush2.bf16.msra.mxu0 %v509
    %694 = vmatprep.subr.bf16.mxu0 0
    %695 = vmatpush2.bf16.msra.mxu0 %v508
    %696 = vmatprep.subr.bf16.mxu0 0
    %697 = vmatpush2.bf16.msra.mxu0 %v507
    %698 = vmatprep.subr.bf16.mxu0 0
    %699 = vmatpush2.bf16.msra.mxu0 %v506
    %700 = vmatprep.subr.bf16.mxu0 0
    %701 = vmatpush2.bf16.msra.mxu0 %v505
    %702 = vmatprep.subr.bf16.mxu0 0
    %703 = vmatpush2.bf16.msra.mxu0 %v504
    %704 = vmatprep.mubr.bf16.mxu0 %v197
    %705 = vmatmul.mubr.bf16.gmra.mxu0 %v196
    %v706 = vpop.f32.mrf.mxu0
    %v707 = vadd.f32 %v667, %v706
    %v708 = vpop.f32.mrf.mxu0
    %v709 = vpop.f32.mrf.mxu0
    %v710 = vpop.f32.mrf.mxu0
    %711 = vdwg.mxu0
    %712 = vmatprep.subr.bf16.mxu0 0
    %713 = vmatpush1.bf16.msra.mxu0 %v519
    %714 = vmatprep.subr.bf16.mxu0 0
    %715 = vmatpush1.bf16.msra.mxu0 %v518
    %716 = vmatprep.subr.bf16.mxu0 0
    %717 = vmatpush1.bf16.msra.mxu0 %v517
    %718 = vmatprep.subr.bf16.mxu0 0
    %719 = vmatpush1.bf16.msra.mxu0 %v516
    %720 = vmatprep.subr.bf16.mxu0 0
    %721 = vmatpush1.bf16.msra.mxu0 %v515
    %722 = vmatprep.subr.bf16.mxu0 0
    %723 = vmatpush1.bf16.msra.mxu0 %v514
    %724 = vmatprep.subr.bf16.mxu0 0
    %725 = vmatpush1.bf16.msra.mxu0 %v513
    %726 = vmatprep.subr.bf16.mxu0 0
    %727 = vmatpush1.bf16.msra.mxu0 %v512
    %728 = vmatprep.subr.bf16.mxu0 0
    %729 = vmatpush2.bf16.msra.mxu0 %v527
    %730 = vmatprep.subr.bf16.mxu0 0
    %731 = vmatpush2.bf16.msra.mxu0 %v526
    %732 = vmatprep.subr.bf16.mxu0 0
    %733 = vmatpush2.bf16.msra.mxu0 %v525
    %734 = vmatprep.subr.bf16.mxu0 0
    %735 = vmatpush2.bf16.msra.mxu0 %v524
    %736 = vmatprep.subr.bf16.mxu0 0
    %737 = vmatpush2.bf16.msra.mxu0 %v523
    %738 = vmatprep.subr.bf16.mxu0 0
    %739 = vmatpush2.bf16.msra.mxu0 %v522
    %740 = vmatprep.subr.bf16.mxu0 0
    %741 = vmatpush2.bf16.msra.mxu0 %v521
    %742 = vmatprep.subr.bf16.mxu0 0
    %743 = vmatpush2.bf16.msra.mxu0 %v520
    %744 = vmatprep.mubr.bf16.mxu0 %v199
    %745 = vmatmul.mubr.bf16.gmra.mxu0 %v198
    %v746 = vpop.f32.mrf.mxu0
    %v747 = vadd.f32 %v707, %v746
    %v748 = vpop.f32.mrf.mxu0
    %v749 = vpop.f32.mrf.mxu0
    %v750 = vpop.f32.mrf.mxu0
    %751 = vdwg.mxu0
    %v752 = vmax.f32 %v747, 0.0
    %v753 = vld [vmem:[%s3] sm:$0xf]
    %v754 = vld [vmem:[%s3 + $0x4] sm:$0xf]
    %v755 = vld [vmem:[%s3 + $0x8] sm:$0xf]
    %v756 = vld [vmem:[%s3 + $0xc] sm:$0xf]
    %v757 = vld [vmem:[%s3 + $0x10] sm:$0xf]
    %v758 = vld [vmem:[%s3 + $0x14] sm:$0xf]
    %v759 = vld [vmem:[%s3 + $0x18] sm:$0xf]
    %v760 = vld [vmem:[%s3 + $0x1c] sm:$0xf]
    %v761 = vld [vmem:[%s3 + $0x20] sm:$0xf]
    %v762 = vld [vmem:[%s3 + $0x24] sm:$0xf]
    %v763 = vld [vmem:[%s3 + $0x28] sm:$0xf]
    %v764 = vld [vmem:[%s3 + $0x2c] sm:$0xf]
    %v765 = vld [vmem:[%s3 + $0x30] sm:$0xf]
    %v766 = vld [vmem:[%s3 + $0x34] sm:$0xf]
    %v767 = vld [vmem:[%s3 + $0x38] sm:$0xf]
    %v768 = vld [vmem:[%s3 + $0x3c] sm:$0xf]
    %v769 = vld [vmem:[%s4] sm:$0x1]
    %v770 = vpack.c.bf16 %v752, %v752
    %v772 = vlaneseq
    %v773 = vshrl.u32 %v772, 7
    %v774 = vsub.s32 0, %v773
    %v775 = vrot.slane %v769, %v774
    %v793 = vunpack.c.l.b16 %v753
    %v794 = vunpack.c.l.b16 %v754
    %v795 = vunpack.c.l.b16 %v755
    %v796 = vunpack.c.l.b16 %v756
    %v797 = vunpack.c.l.b16 %v757
    %v798 = vunpack.c.l.b16 %v758
    %v799 = vunpack.c.l.b16 %v759
    %v800 = vunpack.c.l.b16 %v760
    %v801 = vunpack.c.l.b16 %v761
    %v802 = vunpack.c.l.b16 %v762
    %v803 = vunpack.c.l.b16 %v763
    %v804 = vunpack.c.l.b16 %v764
    %v805 = vunpack.c.l.b16 %v765
    %v806 = vunpack.c.l.b16 %v766
    %v807 = vunpack.c.l.b16 %v767
    %v808 = vunpack.c.l.b16 %v768
    %v809 = vpack.c.b16 %v794, %v793
    %v810 = vpack.c.b16 %v796, %v795
    %v811 = vpack.c.b16 %v798, %v797
    %v812 = vpack.c.b16 %v800, %v799
    %v813 = vpack.c.b16 %v802, %v801
    %v814 = vpack.c.b16 %v804, %v803
    %v815 = vpack.c.b16 %v806, %v805
    %v816 = vpack.c.b16 %v808, %v807
    %825 = vmatprep.subr.bf16.mxu0 0
    %826 = vmatpush1.bf16.msra.mxu0 %v816
    %827 = vmatprep.subr.bf16.mxu0 0
    %828 = vmatpush1.bf16.msra.mxu0 %v815
    %829 = vmatprep.subr.bf16.mxu0 0
    %830 = vmatpush1.bf16.msra.mxu0 %v814
    %831 = vmatprep.subr.bf16.mxu0 0
    %832 = vmatpush1.bf16.msra.mxu0 %v813
    %833 = vmatprep.subr.bf16.mxu0 0
    %834 = vmatpush1.bf16.msra.mxu0 %v812
    %835 = vmatprep.subr.bf16.mxu0 0
    %836 = vmatpush1.bf16.msra.mxu0 %v811
    %837 = vmatprep.subr.bf16.mxu0 0
    %838 = vmatpush1.bf16.msra.mxu0 %v810
    %839 = vmatprep.subr.bf16.mxu0 0
    %840 = vmatpush1.bf16.msra.mxu0 %v809
    %841 = vmatprep.subr.bf16.mxu0 0
    %842 = vmatpush2.bf16.msra.mxu0 0
    %843 = vmatprep.subr.bf16.mxu0 0
    %844 = vmatpush2.bf16.msra.mxu0 0
    %845 = vmatprep.subr.bf16.mxu0 0
    %846 = vmatpush2.bf16.msra.mxu0 0
    %847 = vmatprep.subr.bf16.mxu0 0
    %848 = vmatpush2.bf16.msra.mxu0 0
    %849 = vmatprep.subr.bf16.mxu0 0
    %850 = vmatpush2.bf16.msra.mxu0 0
    %851 = vmatprep.subr.bf16.mxu0 0
    %852 = vmatpush2.bf16.msra.mxu0 0
    %853 = vmatprep.subr.bf16.mxu0 0
    %854 = vmatpush2.bf16.msra.mxu0 0
    %855 = vmatprep.subr.bf16.mxu0 0
    %856 = vmatpush2.bf16.msra.mxu0 0
    %857 = vmatprep.mubr.bf16.mxu0 0
    %858 = vmatmul.mubr.bf16.gmra.mxu0 %v770
    %v859 = vpop.f32.mrf.mxu0
    %v860 = vadd.f32 %v775, %v859
    %v861 = vpop.f32.mrf.mxu0
    %v862 = vpop.f32.mrf.mxu0
    %v863 = vpop.f32.mrf.mxu0
    %864 = vdwg.mxu0
    %v865 = vmax.f32 %v860, 0.0
    %v866 = vld [vmem:[%s5] sm:$0xf]
    %v867 = vld [vmem:[%s5 + $0x4] sm:$0xf]
    %v868 = vld [vmem:[%s5 + $0x8] sm:$0xf]
    %v869 = vld [vmem:[%s5 + $0xc] sm:$0xf]
    %v870 = vld [vmem:[%s5 + $0x10] sm:$0xf]
    %v871 = vld [vmem:[%s5 + $0x14] sm:$0xf]
    %v872 = vld [vmem:[%s5 + $0x18] sm:$0xf]
    %v873 = vld [vmem:[%s5 + $0x1c] sm:$0xf]
    %v874 = vld [vmem:[%s5 + $0x20] sm:$0xf]
    %v875 = vld [vmem:[%s5 + $0x24] sm:$0xf]
    %v876 = vld [vmem:[%s5 + $0x28] sm:$0xf]
    %v877 = vld [vmem:[%s5 + $0x2c] sm:$0xf]
    %v878 = vld [vmem:[%s5 + $0x30] sm:$0xf]
    %v879 = vld [vmem:[%s5 + $0x34] sm:$0xf]
    %v880 = vld [vmem:[%s5 + $0x38] sm:$0xf]
    %v881 = vld [vmem:[%s5 + $0x3c] sm:$0xf]
    %v882 = vld [vmem:[%s6] sm:$0x1]
    %v883 = vpack.c.bf16 %v865, %v865
    %v885 = vlaneseq
    %v886 = vshrl.u32 %v885, 7
    %v887 = vsub.s32 0, %v886
    %v888 = vrot.slane %v882, %v887
    %v906 = vunpack.c.l.b16 %v866
    %v907 = vunpack.c.l.b16 %v867
    %v908 = vunpack.c.l.b16 %v868
    %v909 = vunpack.c.l.b16 %v869
    %v910 = vunpack.c.l.b16 %v870
    %v911 = vunpack.c.l.b16 %v871
    %v912 = vunpack.c.l.b16 %v872
    %v913 = vunpack.c.l.b16 %v873
    %v914 = vunpack.c.l.b16 %v874
    %v915 = vunpack.c.l.b16 %v875
    %v916 = vunpack.c.l.b16 %v876
    %v917 = vunpack.c.l.b16 %v877
    %v918 = vunpack.c.l.b16 %v878
    %v919 = vunpack.c.l.b16 %v879
    %v920 = vunpack.c.l.b16 %v880
    %v921 = vunpack.c.l.b16 %v881
    %v922 = vpack.c.b16 %v907, %v906
    %v923 = vpack.c.b16 %v909, %v908
    %v924 = vpack.c.b16 %v911, %v910
    %v925 = vpack.c.b16 %v913, %v912
    %v926 = vpack.c.b16 %v915, %v914
    %v927 = vpack.c.b16 %v917, %v916
    %v928 = vpack.c.b16 %v919, %v918
    %v929 = vpack.c.b16 %v921, %v920
    %938 = vmatprep.subr.bf16.mxu0 0
    %939 = vmatpush1.bf16.msra.mxu0 %v929
    %940 = vmatprep.subr.bf16.mxu0 0
    %941 = vmatpush1.bf16.msra.mxu0 %v928
    %942 = vmatprep.subr.bf16.mxu0 0
    %943 = vmatpush1.bf16.msra.mxu0 %v927
    %944 = vmatprep.subr.bf16.mxu0 0
    %945 = vmatpush1.bf16.msra.mxu0 %v926
    %946 = vmatprep.subr.bf16.mxu0 0
    %947 = vmatpush1.bf16.msra.mxu0 %v925
    %948 = vmatprep.subr.bf16.mxu0 0
    %949 = vmatpush1.bf16.msra.mxu0 %v924
    %950 = vmatprep.subr.bf16.mxu0 0
    %951 = vmatpush1.bf16.msra.mxu0 %v923
    %952 = vmatprep.subr.bf16.mxu0 0
    %953 = vmatpush1.bf16.msra.mxu0 %v922
    %954 = vmatprep.subr.bf16.mxu0 0
    %955 = vmatpush2.bf16.msra.mxu0 0
    %956 = vmatprep.subr.bf16.mxu0 0
    %957 = vmatpush2.bf16.msra.mxu0 0
    %958 = vmatprep.subr.bf16.mxu0 0
    %959 = vmatpush2.bf16.msra.mxu0 0
    %960 = vmatprep.subr.bf16.mxu0 0
    %961 = vmatpush2.bf16.msra.mxu0 0
    %962 = vmatprep.subr.bf16.mxu0 0
    %963 = vmatpush2.bf16.msra.mxu0 0
    %964 = vmatprep.subr.bf16.mxu0 0
    %965 = vmatpush2.bf16.msra.mxu0 0
    %966 = vmatprep.subr.bf16.mxu0 0
    %967 = vmatpush2.bf16.msra.mxu0 0
    %968 = vmatprep.subr.bf16.mxu0 0
    %969 = vmatpush2.bf16.msra.mxu0 0
    %970 = vmatprep.mubr.bf16.mxu0 0
    %971 = vmatmul.mubr.bf16.gmra.mxu0 %v883
    %v972 = vpop.f32.mrf.mxu0
    %v973 = vadd.f32 %v888, %v972
    %v974 = vpop.f32.mrf.mxu0
    %v975 = vpop.f32.mrf.mxu0
    %v976 = vpop.f32.mrf.mxu0
    %977 = vdwg.mxu0
    %978 = vmax.xlane.f32.xlu0 %v973
    %v979 = vpop.xlane.xlu0 %978
    %v980 = vsub.f32 %v973, %v979
    %v981 = vmul.f32 %v980, 1.442695
    %v982 = vpow.pop %v981
    %983 = vadd.xlane.f32.xlu0 %v982
    %v984 = vpop.xlane.xlu0 %983
    %v985 = vrcp.pop %v984
    %v986 = vmul.f32 %v982, %v985
    %987 = vst [vmem:[%s7] sm:$0xff] %v986
    // Predicated region
    $region34: #{forward.1} parent=1 // pred_check
      _
    $region35: #{forward.1} parent=1 // pred_check_branch
      %989 = sbr.rel (0) target = $region37
    $region36: #{forward.1} parent=1 // pred_region
      _
    $region37: #{forward.1} parent=1 // pred_fallthru
      _
    // Predicated region
    $region38: #{forward.1} parent=1 // pred_check
      _
    $region39: #{forward.1} parent=1 // pred_check_branch
      %991 = sbr.rel (0) target = $region41
    $region40: #{forward.1} parent=1 // pred_region
      _
    $region41: #{forward.1} parent=1 // pred_fallthru
      _
    %992 = vsyncpa [#allocation3], 1

</llo_original>
